<compile_context>
chip_gen: v6e
topology: v6e:2x2x1
jax: 0.10.0
libtpu: 0.0.40
codegen_flags: <defaults>
</compile_context>

<pallas_src>
import jax
import jax.numpy as jnp
from jax.experimental import pallas as pl
from jax.experimental.pallas import tpu as pltpu


def _round_up(x: int, m: int) -> int:
    return ((x + m - 1) // m) * m


def _make_integrand_kernel(t: float, inv_t0: float, amp: float, gamma: float):
    """Build a kernel body with all module scalars folded in at trace time."""
    neg_gamma = -gamma

    def kernel(x_ref, o_ref):
        x = x_ref[...].astype(jnp.float32)
        base = (t - x) * inv_t0

        # Specialize the power for cheap half-integer / integer exponents
        # (single EUP op instead of exp + log); fall back to jnp.power.
        if gamma == 0.5:
            powed = jax.lax.rsqrt(base)
        elif gamma == 1.0:
            powed = 1.0 / base
        elif gamma == 1.5:
            powed = jax.lax.rsqrt(base * base * base)
        elif gamma == 2.0:
            r = 1.0 / base
            powed = r * r
        else:
            powed = jnp.power(base, neg_gamma)

        o_ref[...] = (amp * powed).astype(o_ref.dtype)

    return kernel


def integrand(t_prime, *, t, t0, v, E0, gamma,
              lane_cols: int = 1024, max_tile_rows: int = 256):
    """Elementwise integrand evaluation on TPU via Pallas.

    Accepts an arbitrary-shaped `t_prime`; the wrapper flattens it to a
    lane-dense (rows, lane_cols) slab, pads ragged remainders, runs the tiled
    kernel, and reshapes back to the original shape.
    """
    orig_shape = t_prime.shape
    orig_dtype = t_prime.dtype
    n = int(t_prime.size)

    t = float(t)
    t0 = float(t0)
    amp = float(v) * float(E0)
    inv_t0 = 1.0 / t0
    gamma = float(gamma)

    # Lane-dense slab: rows x lane_cols, rows padded so the block divides evenly.
    cols = lane_cols                              # multiple of 128 (lane axis)
    rows = max(1, -(-n // cols))                  # ceil(n / cols)
    rows8 = _round_up(rows, 8)                    # sublane alignment
    tile_rows = min(max_tile_rows, rows8)         # ~1 MiB block at 256x1024 f32
    rows_padded = _round_up(rows8, tile_rows)
    total = rows_padded * cols

    flat = t_prime.reshape(-1)
    if total > n:
        # Fill so that base == (t - fill)/t0 == 1 -> pow stays finite on padding.
        fill = jnp.full((total - n,), t - t0, dtype=flat.dtype)
        flat = jnp.concatenate([flat, fill])
    slab = flat.reshape(rows_padded, cols)

    grid = (rows_padded // tile_rows,)
    kernel = _make_integrand_kernel(t, inv_t0, amp, gamma)

    out = pl.pallas_call(
        kernel,
        out_shape=jax.ShapeDtypeStruct((rows_padded, cols), orig_dtype),
        grid_spec=pl.GridSpec(
            grid=grid,
            in_specs=[pl.BlockSpec((tile_rows, cols), lambda i: (i, 0))],
            out_specs=pl.BlockSpec((tile_rows, cols), lambda i: (i, 0)),
        ),
        compiler_params=pltpu.CompilerParams(
            dimension_semantics=("parallel",),
        ),
    )(slab)

    return out.reshape(-1)[:n].reshape(orig_shape)


if __name__ == "__main__":
    # Deterministic "module parameters" (scalars from __init__)
    t = 10.0
    t0 = 2.0
    v = 3.0
    E0 = 0.5
    gamma = 1.5

    key = jax.random.PRNGKey(0)
    k1, k2 = jax.random.split(key)

    # Small input consistent with the forward: t_prime is an arbitrary tensor.
    # Keep (t - t_prime) > 0 so the fractional power is real, matching torch.
    t_prime = jax.random.uniform(k1, (16, 128), dtype=jnp.float32,
                                 minval=0.0, maxval=1.0)
    out = integrand(t_prime, t=t, t0=t0, v=v, E0=E0, gamma=gamma)
    out = jax.block_until_ready(out)
    ref = v * E0 * ((t - t_prime) / t0) ** (-gamma)
    assert jnp.allclose(out, ref, rtol=1e-5, atol=1e-5), "mismatch vs reference"

    # Ragged / non-128-aligned shape exercises the padding path.
    t_prime2 = jax.random.uniform(k2, (7, 50), dtype=jnp.float32,
                                  minval=0.0, maxval=1.0)
    out2 = integrand(t_prime2, t=t, t0=t0, v=v, E0=E0, gamma=gamma)
    out2 = jax.block_until_ready(out2)
    ref2 = v * E0 * ((t - t_prime2) / t0) ** (-gamma)
    assert jnp.allclose(out2, ref2, rtol=1e-5, atol=1e-5), "ragged mismatch"

    print("KERNEL_OK")
</pallas_src>

<mosaic_0001>
module attributes {stable_mosaic.version = 11 : i64} {
  func.func @kernel(%arg0: i32, %arg1: memref<8x1024xf32, #tpu.memory_space<vmem>>, %arg2: memref<8x1024xf32, #tpu.memory_space<vmem>>) attributes {dimension_semantics = [#tpu.dimension_semantics<parallel>], iteration_bounds = array<i64: 1>, scalar_prefetch = 0 : i64, scratch_operands = 0 : i64, tpu.core_type = #tpu.core_type<tc>, window_params = [{transform_indices = @transform_0, window_bounds = array<i64: 8, 1024>}, {transform_indices = @transform_1, window_bounds = array<i64: 8, 1024>}]} {
    %c0 = arith.constant 0 : index
    %c0_0 = arith.constant 0 : index
    %0 = vector.load %arg1[%c0, %c0_0] : memref<8x1024xf32, #tpu.memory_space<vmem>>, vector<8x1024xf32>
    %cst = arith.constant 1.000000e+01 : f32
    %1 = vector.broadcast %cst : f32 to vector<8x1024xf32>
    %2 = arith.subf %1, %0 : vector<8x1024xf32>
    %cst_1 = arith.constant 5.000000e-01 : f32
    %3 = vector.broadcast %cst_1 : f32 to vector<8x1024xf32>
    %4 = arith.mulf %2, %3 : vector<8x1024xf32>
    %5 = arith.mulf %4, %4 : vector<8x1024xf32>
    %6 = arith.mulf %5, %4 : vector<8x1024xf32>
    %7 = math.rsqrt %6 : vector<8x1024xf32>
    %cst_2 = arith.constant 1.500000e+00 : f32
    %8 = vector.broadcast %cst_2 : f32 to vector<8x1024xf32>
    %9 = arith.mulf %8, %7 : vector<8x1024xf32>
    %c0_3 = arith.constant 0 : index
    %c0_4 = arith.constant 0 : index
    %10 = vector.load %arg2[%c0_3, %c0_4] : memref<8x1024xf32, #tpu.memory_space<vmem>>, vector<8x1024xf32>
    tpu.vector_store %arg2[%c0_3, %c0_4], %9 {strides = array<i32>} : memref<8x1024xf32, #tpu.memory_space<vmem>>, vector<8x1024xf32>,
    return
  }
  func.func @transform_0(%arg0: i32) -> (i32, i32) {
    %c0_i32 = arith.constant 0 : i32
    %c0_i32_0 = arith.constant 0 : i32
    return %arg0, %c0_i32 : i32, i32
  }
  func.func @transform_1(%arg0: i32) -> (i32, i32) {
    %c0_i32 = arith.constant 0 : i32
    %c0_i32_0 = arith.constant 0 : i32
    return %arg0, %c0_i32 : i32, i32
  }
}

</mosaic_0001>

<llo_original>
// kernel: tpu_custom_call.1
$region0: #{tpu_custom_call.1}
  #allocation0 [shape = 'u32[]', space=smem, size = 0x4, offset = 0x4, fixed_abs, tag = 'smem constant byte address 0x4 - core index']
  #allocation1 [shape = 'u32[144,128]{1,0:T(1,128)}', space=vmem, size = 0x12000, scoped, tag = 'internal scratch']
  %s0 = inlined_call_operand.hbm [shape: f32[8,1024], index: 0, kind: input, shape index: {}]
  %s1 = inlined_call_operand.hbm [shape: f32[8,1024], index: 1, kind: output, shape index: {}]
  %s2 = sld [smem:[#allocation0]]
  $region18: #{tpu_custom_call.1} parent=0
    _
  %s4 = ssub.s32 1, %s2
  %s5 = scalar_select 0, %s4, %s2
  $region1: #{tpu_custom_call.1} parent=0
    #allocation2 [shape = 'u8[32768]{0}', space=vmem, size = 0x8000, scoped, tag = 'input window, operand 0, single buffered']
    #allocation3 [shape = 's32[1]{0}', space=sflag, size = 0x4, scoped, tag = 'scoped memory for tpu_custom_call.1']
    #allocation4 [shape = 's32[1]{0}', space=sflag, size = 0x4, scoped, tag = 'scoped memory for tpu_custom_call.1']
    #allocation5 [shape = 'u8[32768]{0}', space=vmem, size = 0x8000, scoped, tag = 'output window, operand 0, single buffered']
    %6 = vsyncpa [#allocation3], 0
    %7 = vsyncpa [#allocation4], 0
    // Predicated region
    $region2: #{tpu_custom_call.1} parent=1 // pred_check
      _
    $region3: #{tpu_custom_call.1} parent=1 // pred_check_branch
      %9 = sbr.rel (0) target = $region5
    $region4: #{tpu_custom_call.1} parent=1 // pred_region
      %s11 = ssub.s32 1024, 1024
      %12 = vsyncadd [#allocation3], %s11
      %s14 = sshll.u32 [#allocation2], 4
      %s15 = int_to_ptr.vmem [resolvable:$true] %s14
      %17 = dma.hbm_to_vmem [thread:$0]  %s0, 1024, %s15, [#allocation3]
    $region5: #{tpu_custom_call.1} parent=1 // pred_fallthru
      _
    // Predicated region
    $region6: #{tpu_custom_call.1} parent=1 // pred_check
      _
    $region7: #{tpu_custom_call.1} parent=1 // pred_check_branch
      %19 = sbr.rel (0) target = $region9
    $region8: #{tpu_custom_call.1} parent=1 // pred_region
      %20 = dma.done [#allocation3], 1024
    $region9: #{tpu_custom_call.1} parent=1 // pred_fallthru
      _
    %v21 = vld [vmem:[#allocation2] sm:$0xff]
    %v22 = vld [vmem:[#allocation2 + $0x8] sm:$0xff]
    %v23 = vld [vmem:[#allocation2 + $0x10] sm:$0xff]
    %v24 = vld [vmem:[#allocation2 + $0x18] sm:$0xff]
    %v25 = vld [vmem:[#allocation2 + $0x20] sm:$0xff]
    %v26 = vld [vmem:[#allocation2 + $0x28] sm:$0xff]
    %v27 = vld [vmem:[#allocation2 + $0x30] sm:$0xff]
    %v28 = vld [vmem:[#allocation2 + $0x38] sm:$0xff]
    %v29 = vsub.f32 10.0, %v21
    %v30 = vsub.f32 10.0, %v22
    %v31 = vsub.f32 10.0, %v23
    %v32 = vsub.f32 10.0, %v24
    %v33 = vsub.f32 10.0, %v25
    %v34 = vsub.f32 10.0, %v26
    %v35 = vsub.f32 10.0, %v27
    %v36 = vsub.f32 10.0, %v28
    %v37 = vmul.f32 %v29, 0.5
    %v38 = vmul.f32 %v30, 0.5
    %v39 = vmul.f32 %v31, 0.5
    %v40 = vmul.f32 %v32, 0.5
    %v41 = vmul.f32 %v33, 0.5
    %v42 = vmul.f32 %v34, 0.5
    %v43 = vmul.f32 %v35, 0.5
    %v44 = vmul.f32 %v36, 0.5
    %v45 = vmul.f32 %v37, %v37
    %v46 = vmul.f32 %v38, %v38
    %v47 = vmul.f32 %v39, %v39
    %v48 = vmul.f32 %v40, %v40
    %v49 = vmul.f32 %v41, %v41
    %v50 = vmul.f32 %v42, %v42
    %v51 = vmul.f32 %v43, %v43
    %v52 = vmul.f32 %v44, %v44
    %v53 = vmul.f32 %v45, %v37
    %v54 = vmul.f32 %v46, %v38
    %v55 = vmul.f32 %v47, %v39
    %v56 = vmul.f32 %v48, %v40
    %v57 = vmul.f32 %v49, %v41
    %v58 = vmul.f32 %v50, %v42
    %v59 = vmul.f32 %v51, %v43
    %v60 = vmul.f32 %v52, %v44
    %v61 = vrsqrt.pop %v53
    %v62 = vrsqrt.pop %v54
    %v63 = vrsqrt.pop %v55
    %v64 = vrsqrt.pop %v56
    %v65 = vrsqrt.pop %v57
    %v66 = vrsqrt.pop %v58
    %v67 = vrsqrt.pop %v59
    %v68 = vrsqrt.pop %v60
    %v69 = vmul.f32 %v61, 1.5
    %v70 = vmul.f32 %v62, 1.5
    %v71 = vmul.f32 %v63, 1.5
    %v72 = vmul.f32 %v64, 1.5
    %v73 = vmul.f32 %v65, 1.5
    %v74 = vmul.f32 %v66, 1.5
    %v75 = vmul.f32 %v67, 1.5
    %v76 = vmul.f32 %v68, 1.5
    %77 = vst [vmem:[#allocation5] sm:$0xff] %v69
    %78 = vst [vmem:[#allocation5 + $0x8] sm:$0xff] %v70
    %79 = vst [vmem:[#allocation5 + $0x10] sm:$0xff] %v71
    %80 = vst [vmem:[#allocation5 + $0x18] sm:$0xff] %v72
    %81 = vst [vmem:[#allocation5 + $0x20] sm:$0xff] %v73
    %82 = vst [vmem:[#allocation5 + $0x28] sm:$0xff] %v74
    %83 = vst [vmem:[#allocation5 + $0x30] sm:$0xff] %v75
    %84 = vst [vmem:[#allocation5 + $0x38] sm:$0xff] %v76
    // Predicated region
    $region10: #{tpu_custom_call.1} parent=1 // pred_check
      _
    $region11: #{tpu_custom_call.1} parent=1 // pred_check_branch
      %86 = sbr.rel (0) target = $region13
    $region12: #{tpu_custom_call.1} parent=1 // pred_region
      %s88 = ssub.s32 1024, 1024
      %89 = vsyncadd [#allocation4], %s88
      %s91 = sshll.u32 [#allocation5], 4
      %s92 = int_to_ptr.vmem [resolvable:$true] %s91
      %94 = dma.vmem_to_hbm [thread:$0]  %s92, 1024, %s1, [#allocation4]
    $region13: #{tpu_custom_call.1} parent=1 // pred_fallthru
      _
    // Predicated region
    $region14: #{tpu_custom_call.1} parent=1 // pred_check
      _
    $region15: #{tpu_custom_call.1} parent=1 // pred_check_branch
      %96 = sbr.rel (0) target = $region17
    $region16: #{tpu_custom_call.1} parent=1 // pred_region
      %97 = dma.done [#allocation4], 1024
    $region17: #{tpu_custom_call.1} parent=1 // pred_fallthru
      _
    %98 = vsyncpa [#allocation3], 1
    %99 = vsyncpa [#allocation4], 1

</llo_original>
